<compile_context>
chip_gen: v5e
topology: v5e:2x2
jax: 0.10.0
libtpu: 0.0.40
codegen_flags: <defaults>
</compile_context>

<pallas_src>
import functools

import jax
import jax.numpy as jnp
from jax import lax
from jax.experimental import pallas as pl
from jax.experimental.pallas import tpu as pltpu


_INV_SQRT2 = 0.7071067811865476


def _round_up(v, m):
    return (v + m - 1) // m * m


def _ff_kernel(x_ref, w1_ref, b1_ref, w2_ref, b2_ref, o_ref, acc_ref, *,
               compute_dtype):
    # Per grid step (row tile i):
    #   x_ref:  (tm, dim_pad)        input dtype; cast to bf16 here, in VMEM
    #   w1_ref: (nk, dim_pad, tk)    bf16, VMEM-resident (constant index_map)
    #   b1_ref: (nk, 1, tk)          f32
    #   w2_ref: (nk, tk, dim_pad)    bf16, VMEM-resident
    #   b2_ref: (1, dim_pad)         f32
    #   o_ref:  (tm, dim_pad)        output tile (x dtype)
    #   acc_ref:(tm, dim_pad)        f32 accumulator scratch
    nk = w1_ref.shape[0]

    x = x_ref[...].astype(compute_dtype)   # VPU cast, hidden under MXU time
    acc_ref[...] = jnp.zeros_like(acc_ref)

    def body(k, carry):
        # First matmul (MXU, bf16 operands, f32 accumulation) + bias.
        h = jnp.dot(x, w1_ref[k], preferred_element_type=jnp.float32)
        h = h + b1_ref[k]
        # Exact erf GELU (PyTorch nn.GELU default, approximate='none').
        h = 0.5 * h * (1.0 + lax.erf(h * _INV_SQRT2))
        # Second matmul: partial contribution of this hidden sub-tile.
        acc_ref[...] += jnp.dot(h.astype(compute_dtype), w2_ref[k],
                                preferred_element_type=jnp.float32)
        return carry

    lax.fori_loop(0, nk, body, 0, unroll=(nk <= 8))

    # b2 added exactly once, in the epilogue.
    o_ref[...] = (acc_ref[...] + b2_ref[...]).astype(o_ref.dtype)


def feed_forward(x, w1, b1, w2, b2, *, tm=256, tk=512,
                 compute_dtype=jnp.bfloat16):
    """LocalViT FeedForward.  x: (batch, seq, dim); w1: (dim, hidden);
    w2: (hidden, dim).  Returns (batch, seq, dim)."""
    batch, seq, dim = x.shape
    hidden = w1.shape[1]
    n = batch * seq

    # ---- tiling: lane dims padded to 128-multiples => lane-dense stores ----
    dim_pad = _round_up(dim, 128)
    hp0 = _round_up(hidden, 128)
    tk_eff = min(tk, hp0)                    # hidden sub-tile, multiple of 128
    hidden_pad = _round_up(hp0, tk_eff)
    nk = hidden_pad // tk_eff

    n0 = _round_up(n, 16)
    tm_eff = min(tm, n0)
    # Prefer >= 2 row tiles so the 'parallel' axis can feed both v7x TCs,
    # while keeping tm a multiple of 16.
    while n0 // tm_eff < 2 and tm_eff % 32 == 0 and tm_eff >= 32:
        tm_eff //= 2
    n_pad = _round_up(n, tm_eff)
    grid = (n_pad // tm_eff,)

    # ---- operand prep ----
    x2 = x.reshape(n, dim)
    if n_pad != n or dim_pad != dim:
        x2 = jnp.pad(x2, ((0, n_pad - n), (0, dim_pad - dim)))
    # x keeps its dtype: the kernel casts to bf16 in VMEM (no extra HBM pass).

    # Weights: one-time prep (in a real model this is done once at load time).
    if dim_pad != dim or hidden_pad != hidden:
        w1p = jnp.pad(w1, ((0, dim_pad - dim), (0, hidden_pad - hidden)))
        w2p = jnp.pad(w2, ((0, hidden_pad - hidden), (0, dim_pad - dim)))
        b1p = jnp.pad(b1, (0, hidden_pad - hidden))
        b2p = jnp.pad(b2, (0, dim_pad - dim))
    else:
        w1p, w2p, b1p, b2p = w1, w2, b1, b2

    # Pre-split the hidden axis into nk sub-tiles so the kernel indexes a
    # leading axis (cheap dynamic ref[k]) instead of dynamic lane-dim slices.
    w1t = w1p.astype(compute_dtype).reshape(dim_pad, nk, tk_eff).transpose(1, 0, 2)
    w2t = w2p.astype(compute_dtype).reshape(nk, tk_eff, dim_pad)
    b1t = b1p.astype(jnp.float32).reshape(nk, 1, tk_eff)
    b2t = b2p.astype(jnp.float32).reshape(1, dim_pad)

    # ---- VMEM budget (resident weights + double-buffered x/out tiles) ----
    xbytes = x.dtype.itemsize
    cbytes = jnp.dtype(compute_dtype).itemsize
    est = (
        2 * tm_eff * dim_pad * xbytes            # x tiles (double buffered)
        + 2 * tm_eff * dim_pad * xbytes          # out tiles
        + tm_eff * dim_pad * 4                   # f32 accumulator scratch
        + 2 * nk * dim_pad * tk_eff * cbytes     # W1 (resident; 2 bufs alloc'd)
        + 2 * nk * tk_eff * dim_pad * cbytes     # W2 (resident)
        + 2 * (nk * tk_eff + dim_pad) * 4        # biases
        + tm_eff * tk_eff * 4                    # GELU intermediate headroom
    )
    try:
        vmem_cap = int(pltpu.get_tpu_info().vmem_capacity_bytes)
    except Exception:
        vmem_cap = 64 * 1024 * 1024              # conservative: v7x = 64 MiB
    vmem_limit = int(min(max(int(1.5 * est), 32 * 1024 * 1024),
                         int(0.75 * vmem_cap)))

    flops = 4 * n_pad * dim_pad * hidden_pad     # two matmuls
    bytes_accessed = (
        2 * n_pad * dim_pad * xbytes             # read x + write out
        + 2 * dim_pad * hidden_pad * cbytes      # W1 + W2 read exactly once
        + (hidden_pad + dim_pad) * 4             # biases
    )
    cost = pl.CostEstimate(flops=flops,
                           transcendentals=n_pad * hidden_pad,
                           bytes_accessed=bytes_accessed)

    kernel = functools.partial(_ff_kernel, compute_dtype=compute_dtype)

    out = pl.pallas_call(
        kernel,
        out_shape=jax.ShapeDtypeStruct((n_pad, dim_pad), x.dtype),
        grid_spec=pltpu.PrefetchScalarGridSpec(
            num_scalar_prefetch=0,
            grid=grid,
            in_specs=[
                pl.BlockSpec((tm_eff, dim_pad), lambda i: (i, 0)),         # x rows
                pl.BlockSpec((nk, dim_pad, tk_eff), lambda i: (0, 0, 0)),  # W1 (resident)
                pl.BlockSpec((nk, 1, tk_eff), lambda i: (0, 0, 0)),        # b1
                pl.BlockSpec((nk, tk_eff, dim_pad), lambda i: (0, 0, 0)),  # W2 (resident)
                pl.BlockSpec((1, dim_pad), lambda i: (0, 0)),              # b2
            ],
            out_specs=pl.BlockSpec((tm_eff, dim_pad), lambda i: (i, 0)),
            scratch_shapes=[pltpu.VMEM((tm_eff, dim_pad), jnp.float32)],
        ),
        compiler_params=pltpu.CompilerParams(
            dimension_semantics=("parallel",),
            vmem_limit_bytes=vmem_limit,
        ),
        cost_estimate=cost,
    )(x2, w1t, b1t, w2t, b2t)

    return out[:n, :dim].reshape(batch, seq, dim)


def _reference(x, w1, b1, w2, b2):
    h = x @ w1 + b1
    h = 0.5 * h * (1.0 + lax.erf(h * _INV_SQRT2))
    return h @ w2 + b2


if __name__ == "__main__":
    batch, seq, dim, hidden = 2, 8, 16, 32

    key = jax.random.PRNGKey(0)
    kx, k1, k2, k3, k4 = jax.random.split(key, 5)

    x = jax.random.normal(kx, (batch, seq, dim), dtype=jnp.float32)

    # PyTorch Linear weight is (out, in); we store the transposed (in, out) form.
    w1 = jax.random.normal(k1, (dim, hidden), dtype=jnp.float32) * 0.05
    b1 = jax.random.normal(k2, (hidden,), dtype=jnp.float32) * 0.05
    w2 = jax.random.normal(k3, (hidden, dim), dtype=jnp.float32) * 0.05
    b2 = jax.random.normal(k4, (dim,), dtype=jnp.float32) * 0.05

    y = jax.block_until_ready(feed_forward(x, w1, b1, w2, b2))

    y_ref = _reference(x, w1, b1, w2, b2)
    assert y.shape == x.shape
    # bf16 MXU operands with f32 accumulation -> looser tolerance than pure f32.
    assert jnp.allclose(y, y_ref, atol=1e-2, rtol=1e-2), "mismatch vs reference"

    # TODO(synk): nn.Dropout(p=0.0) is the identity at inference and is omitted.
    print("KERNEL_OK")
</pallas_src>

<mosaic_0001>
module attributes {stable_mosaic.version = 11 : i64} {
  func.func @_ff_kernel(%arg0: i32, %arg1: memref<16x128xf32, #tpu.memory_space<vmem>>, %arg2: memref<1x128x128xbf16, #tpu.memory_space<vmem>>, %arg3: memref<1x1x128xf32, #tpu.memory_space<vmem>>, %arg4: memref<1x128x128xbf16, #tpu.memory_space<vmem>>, %arg5: memref<1x128xf32, #tpu.memory_space<vmem>>, %arg6: memref<16x128xf32, #tpu.memory_space<vmem>>, %arg7: memref<16x128xf32, #tpu.memory_space<vmem>>) attributes {dimension_semantics = [#tpu.dimension_semantics<parallel>], iteration_bounds = array<i64: 1>, scalar_prefetch = 0 : i64, scratch_operands = 1 : i64, tpu.core_type = #tpu.core_type<tc>, window_params = [{transform_indices = @transform_0, window_bounds = array<i64: 16, 128>}, {pipeline_mode = #tpu.pipeline_mode<synchronous>, transform_indices = @transform_1, window_bounds = array<i64: 1, 128, 128>}, {pipeline_mode = #tpu.pipeline_mode<synchronous>, transform_indices = @transform_2, window_bounds = array<i64: 1, 1, 128>}, {pipeline_mode = #tpu.pipeline_mode<synchronous>, transform_indices = @transform_3, window_bounds = array<i64: 1, 128, 128>}, {pipeline_mode = #tpu.pipeline_mode<synchronous>, transform_indices = @transform_4, window_bounds = array<i64: 1, 128>}, {transform_indices = @transform_5, window_bounds = array<i64: 16, 128>}]} {
    %c0 = arith.constant 0 : index
    %c0_0 = arith.constant 0 : index
    %0 = vector.load %arg1[%c0, %c0_0] : memref<16x128xf32, #tpu.memory_space<vmem>>, vector<16x128xf32>
    %1 = arith.truncf %0 : vector<16x128xf32> to vector<16x128xbf16>
    %cst = arith.constant 0.000000e+00 : f32
    %2 = vector.broadcast %cst : f32 to vector<16x128xf32>
    %c0_1 = arith.constant 0 : index
    %c0_2 = arith.constant 0 : index
    %3 = vector.load %arg7[%c0_1, %c0_2] : memref<16x128xf32, #tpu.memory_space<vmem>>, vector<16x128xf32>
    tpu.vector_store %arg7[%c0_1, %c0_2], %2 {strides = array<i32>} : memref<16x128xf32, #tpu.memory_space<vmem>>, vector<16x128xf32>,
    %c0_i32 = arith.constant 0 : i32
    %4 = arith.index_cast %c0_i32 : i32 to index
    %c0_3 = arith.constant 0 : index
    %c0_4 = arith.constant 0 : index
    %5 = vector.load %arg2[%4, %c0_3, %c0_4] : memref<1x128x128xbf16, #tpu.memory_space<vmem>>, vector<1x128x128xbf16>
    %6 = vector.shape_cast %5 : vector<1x128x128xbf16> to vector<128x128xbf16>
    %cst_5 = arith.constant dense<0.000000e+00> : vector<16x128xf32>
    %7 = tpu.matmul %1, %6, %cst_5 {dimension_numbers = #tpu.dot_dimension_numbers<[1], [0], [0], [1], [0, 0, 1, 1], [], []>} : vector<16x128xbf16>, vector<128x128xbf16>, vector<16x128xf32> -> vector<16x128xf32>
    %8 = arith.index_cast %c0_i32 : i32 to index
    %c0_6 = arith.constant 0 : index
    %c0_7 = arith.constant 0 : index
    %9 = vector.load %arg3[%8, %c0_6, %c0_7] : memref<1x1x128xf32, #tpu.memory_space<vmem>>, vector<1x1x128xf32>
    %10 = vector.shape_cast %9 : vector<1x1x128xf32> to vector<1x128xf32>
    %11 = vector.broadcast %10 : vector<1x128xf32> to vector<16x128xf32>
    %12 = arith.addf %7, %11 : vector<16x128xf32>
    %cst_8 = arith.constant 5.000000e-01 : f32
    %13 = vector.broadcast %cst_8 : f32 to vector<16x128xf32>
    %14 = arith.mulf %13, %12 : vector<16x128xf32>
    %cst_9 = arith.constant 0.707106769 : f32
    %15 = vector.broadcast %cst_9 : f32 to vector<16x128xf32>
    %16 = arith.mulf %12, %15 : vector<16x128xf32>
    %17 = math.erf %16 : vector<16x128xf32>
    %cst_10 = arith.constant 1.000000e+00 : f32
    %18 = vector.broadcast %cst_10 : f32 to vector<16x128xf32>
    %19 = arith.addf %18, %17 : vector<16x128xf32>
    %20 = arith.mulf %14, %19 : vector<16x128xf32>
    %c0_11 = arith.constant 0 : index
    %c0_12 = arith.constant 0 : index
    %21 = vector.load %arg7[%c0_11, %c0_12] : memref<16x128xf32, #tpu.memory_space<vmem>>, vector<16x128xf32>
    %22 = arith.truncf %20 : vector<16x128xf32> to vector<16x128xbf16>
    %23 = arith.index_cast %c0_i32 : i32 to index
    %c0_13 = arith.constant 0 : index
    %c0_14 = arith.constant 0 : index
    %24 = vector.load %arg4[%23, %c0_13, %c0_14] : memref<1x128x128xbf16, #tpu.memory_space<vmem>>, vector<1x128x128xbf16>
    %25 = vector.shape_cast %24 : vector<1x128x128xbf16> to vector<128x128xbf16>
    %cst_15 = arith.constant dense<0.000000e+00> : vector<16x128xf32>
    %26 = tpu.matmul %22, %25, %cst_15 {dimension_numbers = #tpu.dot_dimension_numbers<[1], [0], [0], [1], [0, 0, 1, 1], [], []>} : vector<16x128xbf16>, vector<128x128xbf16>, vector<16x128xf32> -> vector<16x128xf32>
    %27 = arith.addf %21, %26 : vector<16x128xf32>
    %c0_16 = arith.constant 0 : index
    %c0_17 = arith.constant 0 : index
    %28 = vector.load %arg7[%c0_16, %c0_17] : memref<16x128xf32, #tpu.memory_space<vmem>>, vector<16x128xf32>
    tpu.vector_store %arg7[%c0_16, %c0_17], %27 {strides = array<i32>} : memref<16x128xf32, #tpu.memory_space<vmem>>, vector<16x128xf32>,
    %c1_i32 = arith.constant 1 : i32
    %c0_18 = arith.constant 0 : index
    %c0_19 = arith.constant 0 : index
    %29 = vector.load %arg7[%c0_18, %c0_19] : memref<16x128xf32, #tpu.memory_space<vmem>>, vector<16x128xf32>
    %c0_20 = arith.constant 0 : index
    %c0_21 = arith.constant 0 : index
    %30 = vector.load %arg5[%c0_20, %c0_21] : memref<1x128xf32, #tpu.memory_space<vmem>>, vector<1x128xf32>
    %31 = vector.broadcast %30 : vector<1x128xf32> to vector<16x128xf32>
    %32 = arith.addf %29, %31 : vector<16x128xf32>
    %c0_22 = arith.constant 0 : index
    %c0_23 = arith.constant 0 : index
    %33 = vector.load %arg6[%c0_22, %c0_23] : memref<16x128xf32, #tpu.memory_space<vmem>>, vector<16x128xf32>
    tpu.vector_store %arg6[%c0_22, %c0_23], %32 {strides = array<i32>} : memref<16x128xf32, #tpu.memory_space<vmem>>, vector<16x128xf32>,
    return
  }
  func.func @transform_0(%arg0: i32) -> (i32, i32) {
    %c0_i32 = arith.constant 0 : i32
    %c0_i32_0 = arith.constant 0 : i32
    return %arg0, %c0_i32 : i32, i32
  }
  func.func @transform_1(%arg0: i32) -> (i32, i32, i32) {
    %c0_i32 = arith.constant 0 : i32
    %c0_i32_0 = arith.constant 0 : i32
    %c0_i32_1 = arith.constant 0 : i32
    %c0_i32_2 = arith.constant 0 : i32
    return %c0_i32, %c0_i32_0, %c0_i32_1 : i32, i32, i32
  }
  func.func @transform_2(%arg0: i32) -> (i32, i32, i32) {
    %c0_i32 = arith.constant 0 : i32
    %c0_i32_0 = arith.constant 0 : i32
    %c0_i32_1 = arith.constant 0 : i32
    %c0_i32_2 = arith.constant 0 : i32
    return %c0_i32, %c0_i32_0, %c0_i32_1 : i32, i32, i32
  }
  func.func @transform_3(%arg0: i32) -> (i32, i32, i32) {
    %c0_i32 = arith.constant 0 : i32
    %c0_i32_0 = arith.constant 0 : i32
    %c0_i32_1 = arith.constant 0 : i32
    %c0_i32_2 = arith.constant 0 : i32
    return %c0_i32, %c0_i32_0, %c0_i32_1 : i32, i32, i32
  }
  func.func @transform_4(%arg0: i32) -> (i32, i32) {
    %c0_i32 = arith.constant 0 : i32
    %c0_i32_0 = arith.constant 0 : i32
    %c0_i32_1 = arith.constant 0 : i32
    return %c0_i32, %c0_i32_0 : i32, i32
  }
  func.func @transform_5(%arg0: i32) -> (i32, i32) {
    %c0_i32 = arith.constant 0 : i32
    %c0_i32_0 = arith.constant 0 : i32
    return %arg0, %c0_i32 : i32, i32
  }
}

</mosaic_0001>

<llo_original>
// kernel: tpu_custom_call.1
$region0: #{tpu_custom_call.1}
  #allocation0 [shape = 'u32[]', space=smem, size = 0x4, offset = 0x4, fixed_abs, tag = 'smem constant byte address 0x4 - core index']
  #allocation1 [shape = 'u32[72,128]{1,0:T(1,128)}', space=vmem, size = 0x9000, scoped, tag = 'internal scratch']
  #allocation2 [shape = 'f32[16,128]{1,0:T(8,128)}', space=vmem, size = 0x2000, scoped, tag = 'scratch operand']
  %s0 = inlined_call_operand.hbm [shape: f32[16,128], index: 0, kind: input, shape index: {}]
  %s1 = inlined_call_operand.hbm [shape: bf16[1,128,128], index: 1, kind: input, shape index: {}]
  %s2 = inlined_call_operand.vmem [shape: f32[1,1,128], index: 2, kind: input, shape index: {}]
  %s3 = inlined_call_operand.hbm [shape: bf16[1,128,128], index: 3, kind: input, shape index: {}]
  %s4 = inlined_call_operand.vmem [shape: f32[1,128], index: 4, kind: input, shape index: {}]
  %s5 = inlined_call_operand.hbm [shape: f32[16,128], index: 5, kind: output, shape index: {}]
  %s6 = sld [smem:[#allocation0]]
  $region42: #{tpu_custom_call.1} parent=0
    _
  %s8 = ssub.s32 1, %s6
  %s9 = scalar_select 0, %s8, %s6
  $region1: #{tpu_custom_call.1} parent=0
    #allocation3 [shape = 'u8[8192]{0}', space=vmem, size = 0x2000, scoped, tag = 'input window, operand 0, single buffered']
    #allocation4 [shape = 's32[1]{0}', space=sflag, size = 0x4, scoped, tag = 'scoped memory for tpu_custom_call.1']
    #allocation5 [shape = 's32[1]{0}', space=sflag, size = 0x4, scoped, tag = 'scoped memory for tpu_custom_call.1']
    #allocation6 [shape = 'u8[32768]{0}', space=vmem, size = 0x8000, scoped, tag = 'input window, operand 1, single buffered']
    #allocation7 [shape = 's32[1]{0}', space=sflag, size = 0x4, scoped, tag = 'scoped memory for tpu_custom_call.1']
    #allocation8 [shape = 'u8[32768]{0}', space=vmem, size = 0x8000, scoped, tag = 'input window, operand 3, single buffered']
    #allocation9 [shape = 'u8[8192]{0}', space=vmem, size = 0x2000, scoped, tag = 'output window, operand 0, single buffered']
    %10 = vsyncpa [#allocation4], 0
    %11 = vsyncpa [#allocation7], 0
    %12 = vsyncpa [#allocation5], 0
    // Predicated region
    $region2: #{tpu_custom_call.1} parent=1 // pred_check
      _
    $region3: #{tpu_custom_call.1} parent=1 // pred_check_branch
      %14 = sbr.rel (0) target = $region5
    $region4: #{tpu_custom_call.1} parent=1 // pred_region
      %16 = vsyncadd [#allocation4], 0
      %s17 = sshll.u32 %s0, 4
      %s18 = int_to_ptr.hbm [resolvable:$true] %s17
      %s19 = sshll.u32 [#allocation3], 4
      %s20 = int_to_ptr.vmem [resolvable:$true] %s19
      %25 = dma.hbm_to_vmem [thread:$0]  %s18, 256, %s20, [#allocation4], 128, 128, 8
    $region5: #{tpu_custom_call.1} parent=1 // pred_fallthru
      _
    // Predicated region
    $region6: #{tpu_custom_call.1} parent=1 // pred_check
      _
    $region7: #{tpu_custom_call.1} parent=1 // pred_check_branch
      %27 = sbr.rel (0) target = $region9
    $region8: #{tpu_custom_call.1} parent=1 // pred_region
      %29 = vsyncadd [#allocation7], 0
      %s30 = sshll.u32 %s1, 4
      %s31 = int_to_ptr.hbm [resolvable:$true] %s30
      %s32 = sshll.u32 [#allocation6], 4
      %s33 = int_to_ptr.vmem [resolvable:$true] %s32
      %38 = dma.hbm_to_vmem [thread:$0]  %s31, 1024, %s33, [#allocation7], 64, 64, 4
    $region9: #{tpu_custom_call.1} parent=1 // pred_fallthru
      _
    // Predicated region
    $region10: #{tpu_custom_call.1} parent=1 // pred_check
      _
    $region11: #{tpu_custom_call.1} parent=1 // pred_check_branch
      %40 = sbr.rel (0) target = $region13
    $region12: #{tpu_custom_call.1} parent=1 // pred_region
      _
    $region13: #{tpu_custom_call.1} parent=1 // pred_fallthru
      _
    // Predicated region
    $region14: #{tpu_custom_call.1} parent=1 // pred_check
      _
    $region15: #{tpu_custom_call.1} parent=1 // pred_check_branch
      %42 = sbr.rel (0) target = $region17
    $region16: #{tpu_custom_call.1} parent=1 // pred_region
      %44 = vsyncadd [#allocation7], 0
      %s45 = sshll.u32 %s3, 4
      %s46 = int_to_ptr.hbm [resolvable:$true] %s45
      %s47 = sshll.u32 [#allocation8], 4
      %s48 = int_to_ptr.vmem [resolvable:$true] %s47
      %53 = dma.hbm_to_vmem [thread:$0]  %s46, 1024, %s48, [#allocation7], 64, 64, 4
    $region17: #{tpu_custom_call.1} parent=1 // pred_fallthru
      _
    // Predicated region
    $region18: #{tpu_custom_call.1} parent=1 // pred_check
      _
    $region19: #{tpu_custom_call.1} parent=1 // pred_check_branch
      %55 = sbr.rel (0) target = $region21
    $region20: #{tpu_custom_call.1} parent=1 // pred_region
      _
    $region21: #{tpu_custom_call.1} parent=1 // pred_fallthru
      _
    // Predicated region
    $region22: #{tpu_custom_call.1} parent=1 // pred_check
      _
    $region23: #{tpu_custom_call.1} parent=1 // pred_check_branch
      %57 = sbr.rel (0) target = $region25
    $region24: #{tpu_custom_call.1} parent=1 // pred_region
      %59 = dma.done [#allocation4], 256
    $region25: #{tpu_custom_call.1} parent=1 // pred_fallthru
      _
    // Predicated region
    $region26: #{tpu_custom_call.1} parent=1 // pred_check
      _
    $region27: #{tpu_custom_call.1} parent=1 // pred_check_branch
      %61 = sbr.rel (0) target = $region29
    $region28: #{tpu_custom_call.1} parent=1 // pred_region
      %63 = dma.done [#allocation7], 1024
    $region29: #{tpu_custom_call.1} parent=1 // pred_fallthru
      _
    // Predicated region
    $region30: #{tpu_custom_call.1} parent=1 // pred_check
      _
    $region31: #{tpu_custom_call.1} parent=1 // pred_check_branch
      %65 = sbr.rel (0) target = $region33
    $region32: #{tpu_custom_call.1} parent=1 // pred_region
      %67 = dma.done [#allocation7], 1024
    $region33: #{tpu_custom_call.1} parent=1 // pred_fallthru
      _
    %v68 = vld [vmem:[#allocation3] sm:$0xff]
    %v69 = vld [vmem:[#allocation3 + $0x8] sm:$0xff]
    %v70 = vpack.c.bf16 %v69, %v68
    %71 = vst [vmem:[#allocation2] sm:$0xff] 0.0
    %72 = vst [vmem:[#allocation2 + $0x8] sm:$0xff] 0.0
    %v73 = vld [vmem:[#allocation6] sm:$0xf]
    %v74 = vld [vmem:[#allocation6 + $0x4] sm:$0xf]
    %v75 = vld [vmem:[#allocation6 + $0x8] sm:$0xf]
    %v76 = vld [vmem:[#allocation6 + $0xc] sm:$0xf]
    %v77 = vld [vmem:[#allocation6 + $0x10] sm:$0xf]
    %v78 = vld [vmem:[#allocation6 + $0x14] sm:$0xf]
    %v79 = vld [vmem:[#allocation6 + $0x18] sm:$0xf]
    %v80 = vld [vmem:[#allocation6 + $0x1c] sm:$0xf]
    %v81 = vld [vmem:[#allocation6 + $0x20] sm:$0xf]
    %v82 = vld [vmem:[#allocation6 + $0x24] sm:$0xf]
    %v83 = vld [vmem:[#allocation6 + $0x28] sm:$0xf]
    %v84 = vld [vmem:[#allocation6 + $0x2c] sm:$0xf]
    %v85 = vld [vmem:[#allocation6 + $0x30] sm:$0xf]
    %v86 = vld [vmem:[#allocation6 + $0x34] sm:$0xf]
    %v87 = vld [vmem:[#allocation6 + $0x38] sm:$0xf]
    %v88 = vld [vmem:[#allocation6 + $0x3c] sm:$0xf]
    %v89 = vld [vmem:[%s2] sm:$0x1]
    %v91 = vperm.slane %v89, 0
    %v109 = vunpack.c.l.b16 %v73
    %v110 = vunpack.c.l.b16 %v74
    %v111 = vunpack.c.l.b16 %v75
    %v112 = vunpack.c.l.b16 %v76
    %v113 = vunpack.c.l.b16 %v77
    %v114 = vunpack.c.l.b16 %v78
    %v115 = vunpack.c.l.b16 %v79
    %v116 = vunpack.c.l.b16 %v80
    %v117 = vunpack.c.l.b16 %v81
    %v118 = vunpack.c.l.b16 %v82
    %v119 = vunpack.c.l.b16 %v83
    %v120 = vunpack.c.l.b16 %v84
    %v121 = vunpack.c.l.b16 %v85
    %v122 = vunpack.c.l.b16 %v86
    %v123 = vunpack.c.l.b16 %v87
    %v124 = vunpack.c.l.b16 %v88
    %v125 = vpack.c.b16 %v110, %v109
    %v126 = vpack.c.b16 %v112, %v111
    %v127 = vpack.c.b16 %v114, %v113
    %v128 = vpack.c.b16 %v116, %v115
    %v129 = vpack.c.b16 %v118, %v117
    %v130 = vpack.c.b16 %v120, %v119
    %v131 = vpack.c.b16 %v122, %v121
    %v132 = vpack.c.b16 %v124, %v123
    %141 = vmatpush.bf16.msra.mxu0 %v132
    %142 = vmatpush.bf16.msra.mxu0 %v131
    %143 = vmatpush.bf16.msra.mxu0 %v130
    %144 = vmatpush.bf16.msra.mxu0 %v129
    %145 = vmatpush.bf16.msra.mxu0 %v128
    %146 = vmatpush.bf16.msra.mxu0 %v127
    %147 = vmatpush.bf16.msra.mxu0 %v126
    %148 = vmatpush.bf16.msra.mxu0 %v125
    %149 = vmatmul.bf16.gmra.mxu0 %v70
    %v150 = vpop.f32.mrf.mxu0
    %v151 = vadd.f32 %v91, %v150
    %v152 = vpop.f32.mrf.mxu0
    %v153 = vadd.f32 %v91, %v152
    %154 = vdwg.mxu0
    %v155 = vmul.f32 %v151, 0.5
    %v156 = vmul.f32 %v153, 0.5
    %v157 = vmul.f32 %v151, 0.70710677
    %v158 = vmul.f32 %v153, 0.70710677
    %v159 = vmul.f32 %v157, %v157
    %v160 = vmin.f32 16.0, %v159
    %v161 = vmul.f32 %v160, 2.1237322e-06
    %v162 = vadd.f32 %v161, 0.00028619796
    %v163 = vmul.f32 %v160, %v162
    %v164 = vadd.f32 %v163, 0.0036580483
    %v165 = vmul.f32 %v160, %v164
    %v166 = vadd.f32 %v165, 0.05243302
    %v167 = vmul.f32 %v160, %v166
    %v168 = vadd.f32 %v167, 0.18741608
    %v169 = vmul.f32 %v160, %v168
    %v170 = vadd.f32 %v169, 1.1283791
    %v171 = vmul.f32 %v157, %v170
    %v172 = vmul.f32 %v160, 3.8918573e-05
    %v173 = vadd.f32 %v172, 0.001143296
    %v174 = vmul.f32 %v160, %v173
    %v175 = vadd.f32 %v174, 0.014752088
    %v176 = vmul.f32 %v160, %v175
    %v177 = vadd.f32 %v176, 0.112945676
    %v178 = vmul.f32 %v160, %v177
    %v179 = vadd.f32 %v178, 0.4994258
    %v180 = vmul.f32 %v160, %v179
    %v181 = vadd.f32 %v180, 1.0
    %v182 = vrcp.pop %v181
    %v183 = vmul.f32 %v181, %v182
    %v184 = vsub.f32 1.0, %v183
    %v185 = vmul.f32 %v182, %v184
    %v186 = vadd.f32 %v182, %v185
    %vm187 = vweird.f32 %v181
    %vm188 = vweird.f32 %v182
    %vm189 = vmor %vm187, %vm188
    %v190 = vsel %vm189, %v182, %v186
    %v191 = vand.u32 2147483647, %v181
    %vm192 = vcmp.eq.f32.partialorder %v191, 8.507059e+37
    %v193 = vand.u32 %v181, 2147483648
    %v194 = vor.u32 1.1754944e-38, %v193
    %v195 = vsel %vm192, %v194, %v190
    %v196 = vmul.f32 %v171, %v195
    %v197 = vmin.f32 %v196, 1.0
    %v198 = vmax.f32 %v197, -1.0
    %v199 = vmul.f32 %v158, %v158
    %v200 = vmin.f32 16.0, %v199
    %v201 = vmul.f32 %v200, 2.1237322e-06
    %v202 = vadd.f32 %v201, 0.00028619796
    %v203 = vmul.f32 %v200, %v202
    %v204 = vadd.f32 %v203, 0.0036580483
    %v205 = vmul.f32 %v200, %v204
    %v206 = vadd.f32 %v205, 0.05243302
    %v207 = vmul.f32 %v200, %v206
    %v208 = vadd.f32 %v207, 0.18741608
    %v209 = vmul.f32 %v200, %v208
    %v210 = vadd.f32 %v209, 1.1283791
    %v211 = vmul.f32 %v158, %v210
    %v212 = vmul.f32 %v200, 3.8918573e-05
    %v213 = vadd.f32 %v212, 0.001143296
    %v214 = vmul.f32 %v200, %v213
    %v215 = vadd.f32 %v214, 0.014752088
    %v216 = vmul.f32 %v200, %v215
    %v217 = vadd.f32 %v216, 0.112945676
    %v218 = vmul.f32 %v200, %v217
    %v219 = vadd.f32 %v218, 0.4994258
    %v220 = vmul.f32 %v200, %v219
    %v221 = vadd.f32 %v220, 1.0
    %v222 = vrcp.pop %v221
    %v223 = vmul.f32 %v221, %v222
    %v224 = vsub.f32 1.0, %v223
    %v225 = vmul.f32 %v222, %v224
    %v226 = vadd.f32 %v222, %v225
    %vm227 = vweird.f32 %v221
    %vm228 = vweird.f32 %v222
    %vm229 = vmor %vm227, %vm228
    %v230 = vsel %vm229, %v222, %v226
    %v231 = vand.u32 2147483647, %v221
    %vm232 = vcmp.eq.f32.partialorder %v231, 8.507059e+37
    %v233 = vand.u32 %v221, 2147483648
    %v234 = vor.u32 1.1754944e-38, %v233
    %v235 = vsel %vm232, %v234, %v230
    %v236 = vmul.f32 %v211, %v235
    %v237 = vmin.f32 %v236, 1.0
    %v238 = vmax.f32 %v237, -1.0
    %v239 = vadd.f32 %v198, 1.0
    %v240 = vadd.f32 %v238, 1.0
    %v241 = vmul.f32 %v155, %v239
    %v242 = vmul.f32 %v156, %v240
    %v243 = vld [vmem:[#allocation2] sm:$0xff]
    %v244 = vld [vmem:[#allocation2 + $0x8] sm:$0xff]
    %v245 = vpack.c.bf16 %v242, %v241
    %v246 = vld [vmem:[#allocation8] sm:$0xf]
    %v247 = vld [vmem:[#allocation8 + $0x4] sm:$0xf]
    %v248 = vld [vmem:[#allocation8 + $0x8] sm:$0xf]
    %v249 = vld [vmem:[#allocation8 + $0xc] sm:$0xf]
    %v250 = vld [vmem:[#allocation8 + $0x10] sm:$0xf]
    %v251 = vld [vmem:[#allocation8 + $0x14] sm:$0xf]
    %v252 = vld [vmem:[#allocation8 + $0x18] sm:$0xf]
    %v253 = vld [vmem:[#allocation8 + $0x1c] sm:$0xf]
    %v254 = vld [vmem:[#allocation8 + $0x20] sm:$0xf]
    %v255 = vld [vmem:[#allocation8 + $0x24] sm:$0xf]
    %v256 = vld [vmem:[#allocation8 + $0x28] sm:$0xf]
    %v257 = vld [vmem:[#allocation8 + $0x2c] sm:$0xf]
    %v258 = vld [vmem:[#allocation8 + $0x30] sm:$0xf]
    %v259 = vld [vmem:[#allocation8 + $0x34] sm:$0xf]
    %v260 = vld [vmem:[#allocation8 + $0x38] sm:$0xf]
    %v261 = vld [vmem:[#allocation8 + $0x3c] sm:$0xf]
    %v278 = vunpack.c.l.b16 %v246
    %v279 = vunpack.c.l.b16 %v247
    %v280 = vunpack.c.l.b16 %v248
    %v281 = vunpack.c.l.b16 %v249
    %v282 = vunpack.c.l.b16 %v250
    %v283 = vunpack.c.l.b16 %v251
    %v284 = vunpack.c.l.b16 %v252
    %v285 = vunpack.c.l.b16 %v253
    %v286 = vunpack.c.l.b16 %v254
    %v287 = vunpack.c.l.b16 %v255
    %v288 = vunpack.c.l.b16 %v256
    %v289 = vunpack.c.l.b16 %v257
    %v290 = vunpack.c.l.b16 %v258
    %v291 = vunpack.c.l.b16 %v259
    %v292 = vunpack.c.l.b16 %v260
    %v293 = vunpack.c.l.b16 %v261
    %v294 = vpack.c.b16 %v279, %v278
    %v295 = vpack.c.b16 %v281, %v280
    %v296 = vpack.c.b16 %v283, %v282
    %v297 = vpack.c.b16 %v285, %v284
    %v298 = vpack.c.b16 %v287, %v286
    %v299 = vpack.c.b16 %v289, %v288
    %v300 = vpack.c.b16 %v291, %v290
    %v301 = vpack.c.b16 %v293, %v292
    %310 = vmatpush.bf16.msra.mxu0 %v301
    %311 = vmatpush.bf16.msra.mxu0 %v300
    %312 = vmatpush.bf16.msra.mxu0 %v299
    %313 = vmatpush.bf16.msra.mxu0 %v298
    %314 = vmatpush.bf16.msra.mxu0 %v297
    %315 = vmatpush.bf16.msra.mxu0 %v296
    %316 = vmatpush.bf16.msra.mxu0 %v295
    %317 = vmatpush.bf16.msra.mxu0 %v294
    %318 = vmatmul.bf16.gmra.mxu0 %v245
    %v319 = vpop.f32.mrf.mxu0
    %v320 = vadd.f32 0.0, %v319
    %v321 = vpop.f32.mrf.mxu0
    %v322 = vadd.f32 0.0, %v321
    %323 = vdwg.mxu0
    %v324 = vadd.f32 %v243, %v320
    %v325 = vadd.f32 %v244, %v322
    %326 = vst [vmem:[#allocation2] sm:$0xff] %v324
    %327 = vst [vmem:[#allocation2 + $0x8] sm:$0xff] %v325
    %v328 = vld [vmem:[#allocation2] sm:$0xff]
    %v329 = vld [vmem:[#allocation2 + $0x8] sm:$0xff]
    %v330 = vld [vmem:[%s4] sm:$0x1]
    %v332 = vperm.slane %v330, 0
    %v334 = vadd.f32 %v328, %v332
    %v335 = vadd.f32 %v329, %v332
    %336 = vst [vmem:[#allocation9] sm:$0xff] %v334
    %337 = vst [vmem:[#allocation9 + $0x8] sm:$0xff] %v335
    // Predicated region
    $region34: #{tpu_custom_call.1} parent=1 // pred_check
      _
    $region35: #{tpu_custom_call.1} parent=1 // pred_check_branch
      %339 = sbr.rel (0) target = $region37
    $region36: #{tpu_custom_call.1} parent=1 // pred_region
      %341 = vsyncadd [#allocation5], 0
      %s342 = sshll.u32 [#allocation9], 4
      %s343 = int_to_ptr.vmem [resolvable:$true] %s342
      %s344 = sshll.u32 %s5, 4
      %s345 = int_to_ptr.hbm [resolvable:$true] %s344
      %350 = dma.vmem_to_hbm [thread:$0]  %s343, 256, %s345, [#allocation5], 128, 128, 8
    $region37: #{tpu_custom_call.1} parent=1 // pred_fallthru
      _
    // Predicated region
    $region38: #{tpu_custom_call.1} parent=1 // pred_check
      _
    $region39: #{tpu_custom_call.1} parent=1 // pred_check_branch
      %352 = sbr.rel (0) target = $region41
    $region40: #{tpu_custom_call.1} parent=1 // pred_region
      %354 = dma.done [#allocation5], 256
    $region41: #{tpu_custom_call.1} parent=1 // pred_fallthru
      _
    %355 = vsyncpa [#allocation4], 1
    %356 = vsyncpa [#allocation7], 1
    %357 = vsyncpa [#allocation5], 1

</llo_original>
